<compile_context>
chip_gen: v6e
topology: v6e:2x2x1
jax: 0.10.0
libtpu: 0.0.40
codegen_flags: <defaults>
</compile_context>

<pallas_src>
import jax
import jax.numpy as jnp
from jax.experimental import pallas as pl
from jax.experimental.pallas import tpu as pltpu


def _round_up(x, m):
    return (x + m - 1) // m * m


def mlp_kernel(x_ref, w1_ref, shift_ref, w2_ref, o_ref):
    # x_ref:     (tm, n_input)        bf16
    # w1_ref:    (n_input, n_hidden)  bf16, BN scale pre-folded into columns
    # shift_ref: (1, n_hidden)        f32, folded BN shift
    # w2_ref:    (n_hidden, n_out_p)  bf16, zero-padded to lane-dense width
    # o_ref:     (tm, n_out_p)        f32
    h = jnp.dot(x_ref[...], w1_ref[...], preferred_element_type=jnp.float32)
    h = jnp.maximum(h + shift_ref[...], 0.0)            # BN shift + ReLU (f32)
    out = jnp.dot(h.astype(w2_ref.dtype), w2_ref[...],
                  preferred_element_type=jnp.float32)
    o_ref[...] = out.astype(o_ref.dtype)


def simple_mlp_forward(x_nchw, w1, gamma, beta, running_mean, running_var,
                       w2, eps=1e-5, block_b=256):
    """Eval-mode SimpleMLP forward. x_nchw: (B, C, H, W) float32."""
    B = x_nchw.shape[0]
    x_flat = x_nchw.reshape(B, -1)                       # Flatten (like .view)
    n_input = x_flat.shape[1]
    n_hidden = w1.shape[1]
    n_out = w2.shape[1]

    # --- Fold BatchNorm (eval) into W1 + a shift; cast MXU operands to bf16.
    bn_scale = gamma / jnp.sqrt(running_var + eps)                      # (H,)
    bn_shift = (beta - running_mean * bn_scale).reshape(1, n_hidden)    # f32
    w1_folded = (w1 * bn_scale[None, :]).astype(jnp.bfloat16)

    # --- Lane-dense output: pad n_out up to a multiple of 128.
    n_out_p = _round_up(n_out, 128)
    w2_p = jnp.zeros((n_hidden, n_out_p), jnp.bfloat16)
    w2_p = w2_p.at[:, :n_out].set(w2.astype(jnp.bfloat16))

    # --- Batch tiling (tm rows per block; pad B so the grid divides evenly).
    tm = min(block_b, _round_up(B, 8))
    B_p = _round_up(B, tm)
    x_bf16 = x_flat.astype(jnp.bfloat16)
    if B_p != B:
        x_bf16 = jnp.zeros((B_p, n_input), jnp.bfloat16).at[:B].set(x_bf16)
    grid = (B_p // tm,)

    # --- VMEM budget: double-buffered x/out tiles + (conservatively doubled)
    #     resident weights, with margin, capped at 32 MiB (v7x headroom).
    vmem_bytes = (2 * (tm * n_input * 2 + tm * n_out_p * 4)
                  + 2 * (n_input * n_hidden * 2
                         + n_hidden * n_out_p * 2
                         + n_hidden * 4))
    vmem_limit = int(min(max(2 * vmem_bytes, 4 << 20), 32 << 20))

    out = pl.pallas_call(
        mlp_kernel,
        out_shape=jax.ShapeDtypeStruct((B_p, n_out_p), jnp.float32),
        grid=grid,
        in_specs=[
            pl.BlockSpec((tm, n_input), lambda i: (i, 0)),        # x: tiled
            pl.BlockSpec((n_input, n_hidden), lambda i: (0, 0)),  # W1 resident
            pl.BlockSpec((1, n_hidden), lambda i: (0, 0)),        # shift
            pl.BlockSpec((n_hidden, n_out_p), lambda i: (0, 0)),  # W2 resident
        ],
        out_specs=pl.BlockSpec((tm, n_out_p), lambda i: (i, 0)),
        compiler_params=pltpu.CompilerParams(
            dimension_semantics=("parallel",),
            vmem_limit_bytes=vmem_limit),
    )(x_bf16, w1_folded, bn_shift, w2_p)

    return out[:B, :n_out]


def reference_forward(x_nchw, w1, gamma, beta, running_mean, running_var,
                      w2, eps=1e-5):
    B = x_nchw.shape[0]
    x = x_nchw.reshape(B, -1)
    h = x @ w1
    h = (h - running_mean) / jnp.sqrt(running_var + eps) * gamma + beta
    h = jnp.maximum(h, 0.0)
    return h @ w2


if __name__ == "__main__":
    # Small, deterministic shapes: x is (B=8, C=4, H=16, W=16) -> n_input=1024
    B, C, H, W = 8, 4, 16, 16
    n_input = C * H * W
    n_hidden = 128
    n_out = 32

    key = jax.random.PRNGKey(0)
    kx, kw1, kw2, kg, kb, km, kv = jax.random.split(key, 7)

    x = jax.random.normal(kx, (B, C, H, W), dtype=jnp.float32)

    # Deterministic "synthetic checkpoint" parameters.
    w1 = jax.random.normal(kw1, (n_input, n_hidden), dtype=jnp.float32) * 0.02
    w2 = jax.random.normal(kw2, (n_hidden, n_out), dtype=jnp.float32) * 0.02
    gamma = 1.0 + 0.1 * jax.random.normal(kg, (n_hidden,), dtype=jnp.float32)
    beta = 0.1 * jax.random.normal(kb, (n_hidden,), dtype=jnp.float32)
    running_mean = 0.05 * jax.random.normal(km, (n_hidden,), dtype=jnp.float32)
    running_var = jnp.abs(
        1.0 + 0.1 * jax.random.normal(kv, (n_hidden,), dtype=jnp.float32))

    out = simple_mlp_forward(x, w1, gamma, beta, running_mean, running_var, w2)
    out = jax.block_until_ready(out)

    ref = reference_forward(x, w1, gamma, beta, running_mean, running_var, w2)
    assert out.shape == (B, n_out)
    # bf16 MXU operands -> relaxed tolerance vs. the f32 reference.
    assert jnp.allclose(out, ref, atol=3e-2, rtol=3e-2), "mismatch vs reference"

    print("KERNEL_OK")
</pallas_src>

<mosaic_0001>
module attributes {stable_mosaic.version = 11 : i64} {
  func.func @mlp_kernel(%arg0: i32, %arg1: memref<8x1024xbf16, #tpu.memory_space<vmem>>, %arg2: memref<1024x128xbf16, #tpu.memory_space<vmem>>, %arg3: memref<1x128xf32, #tpu.memory_space<vmem>>, %arg4: memref<128x128xbf16, #tpu.memory_space<vmem>>, %arg5: memref<8x128xf32, #tpu.memory_space<vmem>>) attributes {dimension_semantics = [#tpu.dimension_semantics<parallel>], iteration_bounds = array<i64: 1>, scalar_prefetch = 0 : i64, scratch_operands = 0 : i64, tpu.core_type = #tpu.core_type<tc>, window_params = [{transform_indices = @transform_0, window_bounds = array<i64: 8, 1024>}, {pipeline_mode = #tpu.pipeline_mode<synchronous>, transform_indices = @transform_1, window_bounds = array<i64: 1024, 128>}, {pipeline_mode = #tpu.pipeline_mode<synchronous>, transform_indices = @transform_2, window_bounds = array<i64: 1, 128>}, {pipeline_mode = #tpu.pipeline_mode<synchronous>, transform_indices = @transform_3, window_bounds = array<i64: 128, 128>}, {transform_indices = @transform_4, window_bounds = array<i64: 8, 128>}]} {
    %c0 = arith.constant 0 : index
    %c0_0 = arith.constant 0 : index
    %0 = vector.load %arg1[%c0, %c0_0] : memref<8x1024xbf16, #tpu.memory_space<vmem>>, vector<8x1024xbf16>
    %c0_1 = arith.constant 0 : index
    %c0_2 = arith.constant 0 : index
    %1 = vector.load %arg2[%c0_1, %c0_2] : memref<1024x128xbf16, #tpu.memory_space<vmem>>, vector<1024x128xbf16>
    %cst = arith.constant dense<0.000000e+00> : vector<8x128xf32>
    %2 = tpu.matmul %0, %1, %cst {dimension_numbers = #tpu.dot_dimension_numbers<[1], [0], [0], [1], [0, 0, 1, 1], [], []>} : vector<8x1024xbf16>, vector<1024x128xbf16>, vector<8x128xf32> -> vector<8x128xf32>
    %c0_3 = arith.constant 0 : index
    %c0_4 = arith.constant 0 : index
    %3 = vector.load %arg3[%c0_3, %c0_4] : memref<1x128xf32, #tpu.memory_space<vmem>>, vector<1x128xf32>
    %4 = vector.broadcast %3 : vector<1x128xf32> to vector<8x128xf32>
    %5 = arith.addf %2, %4 : vector<8x128xf32>
    %cst_5 = arith.constant 0.000000e+00 : f32
    %6 = vector.broadcast %cst_5 : f32 to vector<8x128xf32>
    %7 = arith.maximumf %5, %6 : vector<8x128xf32>
    %8 = arith.truncf %7 : vector<8x128xf32> to vector<8x128xbf16>
    %c0_6 = arith.constant 0 : index
    %c0_7 = arith.constant 0 : index
    %9 = vector.load %arg4[%c0_6, %c0_7] : memref<128x128xbf16, #tpu.memory_space<vmem>>, vector<128x128xbf16>
    %cst_8 = arith.constant dense<0.000000e+00> : vector<8x128xf32>
    %10 = tpu.matmul %8, %9, %cst_8 {dimension_numbers = #tpu.dot_dimension_numbers<[1], [0], [0], [1], [0, 0, 1, 1], [], []>} : vector<8x128xbf16>, vector<128x128xbf16>, vector<8x128xf32> -> vector<8x128xf32>
    %c0_9 = arith.constant 0 : index
    %c0_10 = arith.constant 0 : index
    %11 = vector.load %arg5[%c0_9, %c0_10] : memref<8x128xf32, #tpu.memory_space<vmem>>, vector<8x128xf32>
    tpu.vector_store %arg5[%c0_9, %c0_10], %10 {strides = array<i32>} : memref<8x128xf32, #tpu.memory_space<vmem>>, vector<8x128xf32>,
    return
  }
  func.func @transform_0(%arg0: i32) -> (i32, i32) {
    %c0_i32 = arith.constant 0 : i32
    %c0_i32_0 = arith.constant 0 : i32
    return %arg0, %c0_i32 : i32, i32
  }
  func.func @transform_1(%arg0: i32) -> (i32, i32) {
    %c0_i32 = arith.constant 0 : i32
    %c0_i32_0 = arith.constant 0 : i32
    %c0_i32_1 = arith.constant 0 : i32
    return %c0_i32, %c0_i32_0 : i32, i32
  }
  func.func @transform_2(%arg0: i32) -> (i32, i32) {
    %c0_i32 = arith.constant 0 : i32
    %c0_i32_0 = arith.constant 0 : i32
    %c0_i32_1 = arith.constant 0 : i32
    return %c0_i32, %c0_i32_0 : i32, i32
  }
  func.func @transform_3(%arg0: i32) -> (i32, i32) {
    %c0_i32 = arith.constant 0 : i32
    %c0_i32_0 = arith.constant 0 : i32
    %c0_i32_1 = arith.constant 0 : i32
    return %c0_i32, %c0_i32_0 : i32, i32
  }
  func.func @transform_4(%arg0: i32) -> (i32, i32) {
    %c0_i32 = arith.constant 0 : i32
    %c0_i32_0 = arith.constant 0 : i32
    return %arg0, %c0_i32 : i32, i32
  }
}

</mosaic_0001>

<llo_original>
// kernel: tpu_custom_call.1
$region0: #{tpu_custom_call.1}
  #allocation0 [shape = 'u32[]', space=smem, size = 0x4, offset = 0x4, fixed_abs, tag = 'smem constant byte address 0x4 - core index']
  #allocation1 [shape = 'u32[144,128]{1,0:T(1,128)}', space=vmem, size = 0x12000, scoped, tag = 'internal scratch']
  %s0 = inlined_call_operand.hbm [shape: bf16[8,1024], index: 0, kind: input, shape index: {}]
  %s1 = inlined_call_operand.hbm [shape: bf16[1024,128], index: 1, kind: input, shape index: {}]
  %s2 = inlined_call_operand.vmem [shape: f32[1,128], index: 2, kind: input, shape index: {}]
  %s3 = inlined_call_operand.hbm [shape: bf16[128,128], index: 3, kind: input, shape index: {}]
  %s4 = inlined_call_operand.hbm [shape: f32[8,128], index: 4, kind: output, shape index: {}]
  %s5 = sld [smem:[#allocation0]]
  $region38: #{tpu_custom_call.1} parent=0
    _
  %s7 = ssub.s32 1, %s5
  %s8 = scalar_select 0, %s7, %s5
  $region1: #{tpu_custom_call.1} parent=0
    #allocation2 [shape = 'u8[16384]{0}', space=vmem, size = 0x4000, scoped, tag = 'input window, operand 0, single buffered']
    #allocation3 [shape = 's32[1]{0}', space=sflag, size = 0x4, scoped, tag = 'scoped memory for tpu_custom_call.1']
    #allocation4 [shape = 's32[1]{0}', space=sflag, size = 0x4, scoped, tag = 'scoped memory for tpu_custom_call.1']
    #allocation5 [shape = 'u8[262144]{0}', space=vmem, size = 0x40000, scoped, tag = 'input window, operand 1, single buffered']
    #allocation6 [shape = 's32[1]{0}', space=sflag, size = 0x4, scoped, tag = 'scoped memory for tpu_custom_call.1']
    #allocation7 [shape = 'u8[32768]{0}', space=vmem, size = 0x8000, scoped, tag = 'input window, operand 3, single buffered']
    #allocation8 [shape = 'u8[4096]{0}', space=vmem, size = 0x1000, scoped, tag = 'output window, operand 0, single buffered']
    %9 = vsyncpa [#allocation3], 0
    %10 = vsyncpa [#allocation6], 0
    %11 = vsyncpa [#allocation4], 0
    // Predicated region
    $region2: #{tpu_custom_call.1} parent=1 // pred_check
      _
    $region3: #{tpu_custom_call.1} parent=1 // pred_check_branch
      %13 = sbr.rel (0) target = $region5
    $region4: #{tpu_custom_call.1} parent=1 // pred_region
      %s15 = ssub.s32 512, 512
      %16 = vsyncadd [#allocation3], %s15
      %s18 = sshll.u32 [#allocation2], 4
      %s19 = int_to_ptr.vmem [resolvable:$true] %s18
      %21 = dma.hbm_to_vmem [thread:$0]  %s0, 512, %s19, [#allocation3]
    $region5: #{tpu_custom_call.1} parent=1 // pred_fallthru
      _
    // Predicated region
    $region6: #{tpu_custom_call.1} parent=1 // pred_check
      _
    $region7: #{tpu_custom_call.1} parent=1 // pred_check_branch
      %23 = sbr.rel (0) target = $region9
    $region8: #{tpu_custom_call.1} parent=1 // pred_region
      %s25 = ssub.s32 8192, 8192
      %26 = vsyncadd [#allocation6], %s25
      %s27 = sshll.u32 [#allocation5], 4
      %s28 = int_to_ptr.vmem [resolvable:$true] %s27
      %33 = dma.hbm_to_vmem [thread:$0]  %s1, 8192, %s28, [#allocation6], 64, 64, 4
    $region9: #{tpu_custom_call.1} parent=1 // pred_fallthru
      _
    // Predicated region
    $region10: #{tpu_custom_call.1} parent=1 // pred_check
      _
    $region11: #{tpu_custom_call.1} parent=1 // pred_check_branch
      %35 = sbr.rel (0) target = $region13
    $region12: #{tpu_custom_call.1} parent=1 // pred_region
      _
    $region13: #{tpu_custom_call.1} parent=1 // pred_fallthru
      _
    // Predicated region
    $region14: #{tpu_custom_call.1} parent=1 // pred_check
      _
    $region15: #{tpu_custom_call.1} parent=1 // pred_check_branch
      %37 = sbr.rel (0) target = $region17
    $region16: #{tpu_custom_call.1} parent=1 // pred_region
      %s39 = ssub.s32 1024, 1024
      %40 = vsyncadd [#allocation6], %s39
      %s41 = sshll.u32 [#allocation7], 4
      %s42 = int_to_ptr.vmem [resolvable:$true] %s41
      %47 = dma.hbm_to_vmem [thread:$0]  %s3, 1024, %s42, [#allocation6], 64, 64, 4
    $region17: #{tpu_custom_call.1} parent=1 // pred_fallthru
      _
    // Predicated region
    $region18: #{tpu_custom_call.1} parent=1 // pred_check
      _
    $region19: #{tpu_custom_call.1} parent=1 // pred_check_branch
      %49 = sbr.rel (0) target = $region21
    $region20: #{tpu_custom_call.1} parent=1 // pred_region
      %50 = dma.done [#allocation3], 512
    $region21: #{tpu_custom_call.1} parent=1 // pred_fallthru
      _
    // Predicated region
    $region22: #{tpu_custom_call.1} parent=1 // pred_check
      _
    $region23: #{tpu_custom_call.1} parent=1 // pred_check_branch
      %52 = sbr.rel (0) target = $region25
    $region24: #{tpu_custom_call.1} parent=1 // pred_region
      %53 = dma.done [#allocation6], 8192
    $region25: #{tpu_custom_call.1} parent=1 // pred_fallthru
      _
    // Predicated region
    $region26: #{tpu_custom_call.1} parent=1 // pred_check
      _
    $region27: #{tpu_custom_call.1} parent=1 // pred_check_branch
      %55 = sbr.rel (0) target = $region29
    $region28: #{tpu_custom_call.1} parent=1 // pred_region
      %56 = dma.done [#allocation6], 1024
    $region29: #{tpu_custom_call.1} parent=1 // pred_fallthru
      _
    %v58 = vld [vmem:[#allocation2] sm:$0xff]
    %v59 = vld [vmem:[#allocation2 + $0x8] sm:$0xff]
    %v60 = vld [vmem:[#allocation2 + $0x10] sm:$0xff]
    %v61 = vld [vmem:[#allocation2 + $0x18] sm:$0xff]
    %v62 = vld [vmem:[#allocation5] sm:$0xf]
    %v63 = vld [vmem:[#allocation5 + $0x4] sm:$0xf]
    %v64 = vld [vmem:[#allocation5 + $0x8] sm:$0xf]
    %v65 = vld [vmem:[#allocation5 + $0xc] sm:$0xf]
    %v66 = vld [vmem:[#allocation5 + $0x10] sm:$0xf]
    %v67 = vld [vmem:[#allocation5 + $0x14] sm:$0xf]
    %v68 = vld [vmem:[#allocation5 + $0x18] sm:$0xf]
    %v69 = vld [vmem:[#allocation5 + $0x1c] sm:$0xf]
    %v70 = vld [vmem:[#allocation5 + $0x20] sm:$0xf]
    %v71 = vld [vmem:[#allocation5 + $0x24] sm:$0xf]
    %v72 = vld [vmem:[#allocation5 + $0x28] sm:$0xf]
    %v73 = vld [vmem:[#allocation5 + $0x2c] sm:$0xf]
    %v74 = vld [vmem:[#allocation5 + $0x30] sm:$0xf]
    %v75 = vld [vmem:[#allocation5 + $0x34] sm:$0xf]
    %v76 = vld [vmem:[#allocation5 + $0x38] sm:$0xf]
    %v77 = vld [vmem:[#allocation5 + $0x3c] sm:$0xf]
    %v78 = vld [vmem:[#allocation5 + $0x40] sm:$0xf]
    %v79 = vld [vmem:[#allocation5 + $0x44] sm:$0xf]
    %v80 = vld [vmem:[#allocation5 + $0x48] sm:$0xf]
    %v81 = vld [vmem:[#allocation5 + $0x4c] sm:$0xf]
    %v82 = vld [vmem:[#allocation5 + $0x50] sm:$0xf]
    %v83 = vld [vmem:[#allocation5 + $0x54] sm:$0xf]
    %v84 = vld [vmem:[#allocation5 + $0x58] sm:$0xf]
    %v85 = vld [vmem:[#allocation5 + $0x5c] sm:$0xf]
    %v86 = vld [vmem:[#allocation5 + $0x60] sm:$0xf]
    %v87 = vld [vmem:[#allocation5 + $0x64] sm:$0xf]
    %v88 = vld [vmem:[#allocation5 + $0x68] sm:$0xf]
    %v89 = vld [vmem:[#allocation5 + $0x6c] sm:$0xf]
    %v90 = vld [vmem:[#allocation5 + $0x70] sm:$0xf]
    %v91 = vld [vmem:[#allocation5 + $0x74] sm:$0xf]
    %v92 = vld [vmem:[#allocation5 + $0x78] sm:$0xf]
    %v93 = vld [vmem:[#allocation5 + $0x7c] sm:$0xf]
    %v94 = vld [vmem:[#allocation5 + $0x80] sm:$0xf]
    %v95 = vld [vmem:[#allocation5 + $0x84] sm:$0xf]
    %v96 = vld [vmem:[#allocation5 + $0x88] sm:$0xf]
    %v97 = vld [vmem:[#allocation5 + $0x8c] sm:$0xf]
    %v98 = vld [vmem:[#allocation5 + $0x90] sm:$0xf]
    %v99 = vld [vmem:[#allocation5 + $0x94] sm:$0xf]
    %v100 = vld [vmem:[#allocation5 + $0x98] sm:$0xf]
    %v101 = vld [vmem:[#allocation5 + $0x9c] sm:$0xf]
    %v102 = vld [vmem:[#allocation5 + $0xa0] sm:$0xf]
    %v103 = vld [vmem:[#allocation5 + $0xa4] sm:$0xf]
    %v104 = vld [vmem:[#allocation5 + $0xa8] sm:$0xf]
    %v105 = vld [vmem:[#allocation5 + $0xac] sm:$0xf]
    %v106 = vld [vmem:[#allocation5 + $0xb0] sm:$0xf]
    %v107 = vld [vmem:[#allocation5 + $0xb4] sm:$0xf]
    %v108 = vld [vmem:[#allocation5 + $0xb8] sm:$0xf]
    %v109 = vld [vmem:[#allocation5 + $0xbc] sm:$0xf]
    %v110 = vld [vmem:[#allocation5 + $0xc0] sm:$0xf]
    %v111 = vld [vmem:[#allocation5 + $0xc4] sm:$0xf]
    %v112 = vld [vmem:[#allocation5 + $0xc8] sm:$0xf]
    %v113 = vld [vmem:[#allocation5 + $0xcc] sm:$0xf]
    %v114 = vld [vmem:[#allocation5 + $0xd0] sm:$0xf]
    %v115 = vld [vmem:[#allocation5 + $0xd4] sm:$0xf]
    %v116 = vld [vmem:[#allocation5 + $0xd8] sm:$0xf]
    %v117 = vld [vmem:[#allocation5 + $0xdc] sm:$0xf]
    %v118 = vld [vmem:[#allocation5 + $0xe0] sm:$0xf]
    %v119 = vld [vmem:[#allocation5 + $0xe4] sm:$0xf]
    %v120 = vld [vmem:[#allocation5 + $0xe8] sm:$0xf]
    %v121 = vld [vmem:[#allocation5 + $0xec] sm:$0xf]
    %v122 = vld [vmem:[#allocation5 + $0xf0] sm:$0xf]
    %v123 = vld [vmem:[#allocation5 + $0xf4] sm:$0xf]
    %v124 = vld [vmem:[#allocation5 + $0xf8] sm:$0xf]
    %v125 = vld [vmem:[#allocation5 + $0xfc] sm:$0xf]
    %v126 = vld [vmem:[#allocation5 + $0x100] sm:$0xf]
    %v127 = vld [vmem:[#allocation5 + $0x104] sm:$0xf]
    %v128 = vld [vmem:[#allocation5 + $0x108] sm:$0xf]
    %v129 = vld [vmem:[#allocation5 + $0x10c] sm:$0xf]
    %v130 = vld [vmem:[#allocation5 + $0x110] sm:$0xf]
    %v131 = vld [vmem:[#allocation5 + $0x114] sm:$0xf]
    %v132 = vld [vmem:[#allocation5 + $0x118] sm:$0xf]
    %v133 = vld [vmem:[#allocation5 + $0x11c] sm:$0xf]
    %v134 = vld [vmem:[#allocation5 + $0x120] sm:$0xf]
    %v135 = vld [vmem:[#allocation5 + $0x124] sm:$0xf]
    %v136 = vld [vmem:[#allocation5 + $0x128] sm:$0xf]
    %v137 = vld [vmem:[#allocation5 + $0x12c] sm:$0xf]
    %v138 = vld [vmem:[#allocation5 + $0x130] sm:$0xf]
    %v139 = vld [vmem:[#allocation5 + $0x134] sm:$0xf]
    %v140 = vld [vmem:[#allocation5 + $0x138] sm:$0xf]
    %v141 = vld [vmem:[#allocation5 + $0x13c] sm:$0xf]
    %v142 = vld [vmem:[#allocation5 + $0x140] sm:$0xf]
    %v143 = vld [vmem:[#allocation5 + $0x144] sm:$0xf]
    %v144 = vld [vmem:[#allocation5 + $0x148] sm:$0xf]
    %v145 = vld [vmem:[#allocation5 + $0x14c] sm:$0xf]
    %v146 = vld [vmem:[#allocation5 + $0x150] sm:$0xf]
    %v147 = vld [vmem:[#allocation5 + $0x154] sm:$0xf]
    %v148 = vld [vmem:[#allocation5 + $0x158] sm:$0xf]
    %v149 = vld [vmem:[#allocation5 + $0x15c] sm:$0xf]
    %v150 = vld [vmem:[#allocation5 + $0x160] sm:$0xf]
    %v151 = vld [vmem:[#allocation5 + $0x164] sm:$0xf]
    %v152 = vld [vmem:[#allocation5 + $0x168] sm:$0xf]
    %v153 = vld [vmem:[#allocation5 + $0x16c] sm:$0xf]
    %v154 = vld [vmem:[#allocation5 + $0x170] sm:$0xf]
    %v155 = vld [vmem:[#allocation5 + $0x174] sm:$0xf]
    %v156 = vld [vmem:[#allocation5 + $0x178] sm:$0xf]
    %v157 = vld [vmem:[#allocation5 + $0x17c] sm:$0xf]
    %v158 = vld [vmem:[#allocation5 + $0x180] sm:$0xf]
    %v159 = vld [vmem:[#allocation5 + $0x184] sm:$0xf]
    %v160 = vld [vmem:[#allocation5 + $0x188] sm:$0xf]
    %v161 = vld [vmem:[#allocation5 + $0x18c] sm:$0xf]
    %v162 = vld [vmem:[#allocation5 + $0x190] sm:$0xf]
    %v163 = vld [vmem:[#allocation5 + $0x194] sm:$0xf]
    %v164 = vld [vmem:[#allocation5 + $0x198] sm:$0xf]
    %v165 = vld [vmem:[#allocation5 + $0x19c] sm:$0xf]
    %v166 = vld [vmem:[#allocation5 + $0x1a0] sm:$0xf]
    %v167 = vld [vmem:[#allocation5 + $0x1a4] sm:$0xf]
    %v168 = vld [vmem:[#allocation5 + $0x1a8] sm:$0xf]
    %v169 = vld [vmem:[#allocation5 + $0x1ac] sm:$0xf]
    %v170 = vld [vmem:[#allocation5 + $0x1b0] sm:$0xf]
    %v171 = vld [vmem:[#allocation5 + $0x1b4] sm:$0xf]
    %v172 = vld [vmem:[#allocation5 + $0x1b8] sm:$0xf]
    %v173 = vld [vmem:[#allocation5 + $0x1bc] sm:$0xf]
    %v174 = vld [vmem:[#allocation5 + $0x1c0] sm:$0xf]
    %v175 = vld [vmem:[#allocation5 + $0x1c4] sm:$0xf]
    %v176 = vld [vmem:[#allocation5 + $0x1c8] sm:$0xf]
    %v177 = vld [vmem:[#allocation5 + $0x1cc] sm:$0xf]
    %v178 = vld [vmem:[#allocation5 + $0x1d0] sm:$0xf]
    %v179 = vld [vmem:[#allocation5 + $0x1d4] sm:$0xf]
    %v180 = vld [vmem:[#allocation5 + $0x1d8] sm:$0xf]
    %v181 = vld [vmem:[#allocation5 + $0x1dc] sm:$0xf]
    %v182 = vld [vmem:[#allocation5 + $0x1e0] sm:$0xf]
    %v183 = vld [vmem:[#allocation5 + $0x1e4] sm:$0xf]
    %v184 = vld [vmem:[#allocation5 + $0x1e8] sm:$0xf]
    %v185 = vld [vmem:[#allocation5 + $0x1ec] sm:$0xf]
    %v186 = vld [vmem:[#allocation5 + $0x1f0] sm:$0xf]
    %v187 = vld [vmem:[#allocation5 + $0x1f4] sm:$0xf]
    %v188 = vld [vmem:[#allocation5 + $0x1f8] sm:$0xf]
    %v189 = vld [vmem:[#allocation5 + $0x1fc] sm:$0xf]
    %v190 = vld [vmem:[%s2] sm:$0x1]
    %v192 = vlaneseq
    %v193 = vshrl.u32 %v192, 7
    %v194 = vsub.s32 0, %v193
    %v195 = vrot.slane %v190, %v194
    %v201 = vunpack.c.l.b16 %v58
    %v202 = vunpack.c.h.b16 %v58
    %v203 = vunpack.c.l.b16 %v59
    %v204 = vunpack.c.h.b16 %v59
    %v205 = vunpack.c.l.b16 %v60
    %v206 = vunpack.c.h.b16 %v60
    %v207 = vunpack.c.l.b16 %v61
    %v208 = vunpack.c.h.b16 %v61
    %v209 = vpack.c.b16 %v201, %v201
    %v210 = vpack.c.b16 %v202, %v202
    %v211 = vpack.c.b16 %v203, %v203
    %v212 = vpack.c.b16 %v204, %v204
    %v213 = vpack.c.b16 %v205, %v205
    %v214 = vpack.c.b16 %v206, %v206
    %v215 = vpack.c.b16 %v207, %v207
    %v216 = vpack.c.b16 %v208, %v208
    %v353 = vunpack.c.l.b16 %v62
    %v354 = vunpack.c.l.b16 %v63
    %v355 = vunpack.c.l.b16 %v64
    %v356 = vunpack.c.l.b16 %v65
    %v357 = vunpack.c.l.b16 %v66
    %v358 = vunpack.c.l.b16 %v67
    %v359 = vunpack.c.l.b16 %v68
    %v360 = vunpack.c.l.b16 %v69
    %v361 = vunpack.c.l.b16 %v70
    %v362 = vunpack.c.l.b16 %v71
    %v363 = vunpack.c.l.b16 %v72
    %v364 = vunpack.c.l.b16 %v73
    %v365 = vunpack.c.l.b16 %v74
    %v366 = vunpack.c.l.b16 %v75
    %v367 = vunpack.c.l.b16 %v76
    %v368 = vunpack.c.l.b16 %v77
    %v369 = vunpack.c.l.b16 %v78
    %v370 = vunpack.c.l.b16 %v79
    %v371 = vunpack.c.l.b16 %v80
    %v372 = vunpack.c.l.b16 %v81
    %v373 = vunpack.c.l.b16 %v82
    %v374 = vunpack.c.l.b16 %v83
    %v375 = vunpack.c.l.b16 %v84
    %v376 = vunpack.c.l.b16 %v85
    %v377 = vunpack.c.l.b16 %v86
    %v378 = vunpack.c.l.b16 %v87
    %v379 = vunpack.c.l.b16 %v88
    %v380 = vunpack.c.l.b16 %v89
    %v381 = vunpack.c.l.b16 %v90
    %v382 = vunpack.c.l.b16 %v91
    %v383 = vunpack.c.l.b16 %v92
    %v384 = vunpack.c.l.b16 %v93
    %v385 = vunpack.c.l.b16 %v94
    %v386 = vunpack.c.l.b16 %v95
    %v387 = vunpack.c.l.b16 %v96
    %v388 = vunpack.c.l.b16 %v97
    %v389 = vunpack.c.l.b16 %v98
    %v390 = vunpack.c.l.b16 %v99
    %v391 = vunpack.c.l.b16 %v100
    %v392 = vunpack.c.l.b16 %v101
    %v393 = vunpack.c.l.b16 %v102
    %v394 = vunpack.c.l.b16 %v103
    %v395 = vunpack.c.l.b16 %v104
    %v396 = vunpack.c.l.b16 %v105
    %v397 = vunpack.c.l.b16 %v106
    %v398 = vunpack.c.l.b16 %v107
    %v399 = vunpack.c.l.b16 %v108
    %v400 = vunpack.c.l.b16 %v109
    %v401 = vunpack.c.l.b16 %v110
    %v402 = vunpack.c.l.b16 %v111
    %v403 = vunpack.c.l.b16 %v112
    %v404 = vunpack.c.l.b16 %v113
    %v405 = vunpack.c.l.b16 %v114
    %v406 = vunpack.c.l.b16 %v115
    %v407 = vunpack.c.l.b16 %v116
    %v408 = vunpack.c.l.b16 %v117
    %v409 = vunpack.c.l.b16 %v118
    %v410 = vunpack.c.l.b16 %v119
    %v411 = vunpack.c.l.b16 %v120
    %v412 = vunpack.c.l.b16 %v121
    %v413 = vunpack.c.l.b16 %v122
    %v414 = vunpack.c.l.b16 %v123
    %v415 = vunpack.c.l.b16 %v124
    %v416 = vunpack.c.l.b16 %v125
    %v417 = vunpack.c.l.b16 %v126
    %v418 = vunpack.c.l.b16 %v127
    %v419 = vunpack.c.l.b16 %v128
    %v420 = vunpack.c.l.b16 %v129
    %v421 = vunpack.c.l.b16 %v130
    %v422 = vunpack.c.l.b16 %v131
    %v423 = vunpack.c.l.b16 %v132
    %v424 = vunpack.c.l.b16 %v133
    %v425 = vunpack.c.l.b16 %v134
    %v426 = vunpack.c.l.b16 %v135
    %v427 = vunpack.c.l.b16 %v136
    %v428 = vunpack.c.l.b16 %v137
    %v429 = vunpack.c.l.b16 %v138
    %v430 = vunpack.c.l.b16 %v139
    %v431 = vunpack.c.l.b16 %v140
    %v432 = vunpack.c.l.b16 %v141
    %v433 = vunpack.c.l.b16 %v142
    %v434 = vunpack.c.l.b16 %v143
    %v435 = vunpack.c.l.b16 %v144
    %v436 = vunpack.c.l.b16 %v145
    %v437 = vunpack.c.l.b16 %v146
    %v438 = vunpack.c.l.b16 %v147
    %v439 = vunpack.c.l.b16 %v148
    %v440 = vunpack.c.l.b16 %v149
    %v441 = vunpack.c.l.b16 %v150
    %v442 = vunpack.c.l.b16 %v151
    %v443 = vunpack.c.l.b16 %v152
    %v444 = vunpack.c.l.b16 %v153
    %v445 = vunpack.c.l.b16 %v154
    %v446 = vunpack.c.l.b16 %v155
    %v447 = vunpack.c.l.b16 %v156
    %v448 = vunpack.c.l.b16 %v157
    %v449 = vunpack.c.l.b16 %v158
    %v450 = vunpack.c.l.b16 %v159
    %v451 = vunpack.c.l.b16 %v160
    %v452 = vunpack.c.l.b16 %v161
    %v453 = vunpack.c.l.b16 %v162
    %v454 = vunpack.c.l.b16 %v163
    %v455 = vunpack.c.l.b16 %v164
    %v456 = vunpack.c.l.b16 %v165
    %v457 = vunpack.c.l.b16 %v166
    %v458 = vunpack.c.l.b16 %v167
    %v459 = vunpack.c.l.b16 %v168
    %v460 = vunpack.c.l.b16 %v169
    %v461 = vunpack.c.l.b16 %v170
    %v462 = vunpack.c.l.b16 %v171
    %v463 = vunpack.c.l.b16 %v172
    %v464 = vunpack.c.l.b16 %v173
    %v465 = vunpack.c.l.b16 %v174
    %v466 = vunpack.c.l.b16 %v175
    %v467 = vunpack.c.l.b16 %v176
    %v468 = vunpack.c.l.b16 %v177
    %v469 = vunpack.c.l.b16 %v178
    %v470 = vunpack.c.l.b16 %v179
    %v471 = vunpack.c.l.b16 %v180
    %v472 = vunpack.c.l.b16 %v181
    %v473 = vunpack.c.l.b16 %v182
    %v474 = vunpack.c.l.b16 %v183
    %v475 = vunpack.c.l.b16 %v184
    %v476 = vunpack.c.l.b16 %v185
    %v477 = vunpack.c.l.b16 %v186
    %v478 = vunpack.c.l.b16 %v187
    %v479 = vunpack.c.l.b16 %v188
    %v480 = vunpack.c.l.b16 %v189
    %v481 = vpack.c.b16 %v354, %v353
    %v482 = vpack.c.b16 %v356, %v355
    %v483 = vpack.c.b16 %v358, %v357
    %v484 = vpack.c.b16 %v360, %v359
    %v485 = vpack.c.b16 %v362, %v361
    %v486 = vpack.c.b16 %v364, %v363
    %v487 = vpack.c.b16 %v366, %v365
    %v488 = vpack.c.b16 %v368, %v367
    %v489 = vpack.c.b16 %v370, %v369
    %v490 = vpack.c.b16 %v372, %v371
    %v491 = vpack.c.b16 %v374, %v373
    %v492 = vpack.c.b16 %v376, %v375
    %v493 = vpack.c.b16 %v378, %v377
    %v494 = vpack.c.b16 %v380, %v379
    %v495 = vpack.c.b16 %v382, %v381
    %v496 = vpack.c.b16 %v384, %v383
    %v497 = vpack.c.b16 %v386, %v385
    %v498 = vpack.c.b16 %v388, %v387
    %v499 = vpack.c.b16 %v390, %v389
    %v500 = vpack.c.b16 %v392, %v391
    %v501 = vpack.c.b16 %v394, %v393
    %v502 = vpack.c.b16 %v396, %v395
    %v503 = vpack.c.b16 %v398, %v397
    %v504 = vpack.c.b16 %v400, %v399
    %v505 = vpack.c.b16 %v402, %v401
    %v506 = vpack.c.b16 %v404, %v403
    %v507 = vpack.c.b16 %v406, %v405
    %v508 = vpack.c.b16 %v408, %v407
    %v509 = vpack.c.b16 %v410, %v409
    %v510 = vpack.c.b16 %v412, %v411
    %v511 = vpack.c.b16 %v414, %v413
    %v512 = vpack.c.b16 %v416, %v415
    %v513 = vpack.c.b16 %v418, %v417
    %v514 = vpack.c.b16 %v420, %v419
    %v515 = vpack.c.b16 %v422, %v421
    %v516 = vpack.c.b16 %v424, %v423
    %v517 = vpack.c.b16 %v426, %v425
    %v518 = vpack.c.b16 %v428, %v427
    %v519 = vpack.c.b16 %v430, %v429
    %v520 = vpack.c.b16 %v432, %v431
    %v521 = vpack.c.b16 %v434, %v433
    %v522 = vpack.c.b16 %v436, %v435
    %v523 = vpack.c.b16 %v438, %v437
    %v524 = vpack.c.b16 %v440, %v439
    %v525 = vpack.c.b16 %v442, %v441
    %v526 = vpack.c.b16 %v444, %v443
    %v527 = vpack.c.b16 %v446, %v445
    %v528 = vpack.c.b16 %v448, %v447
    %v529 = vpack.c.b16 %v450, %v449
    %v530 = vpack.c.b16 %v452, %v451
    %v531 = vpack.c.b16 %v454, %v453
    %v532 = vpack.c.b16 %v456, %v455
    %v533 = vpack.c.b16 %v458, %v457
    %v534 = vpack.c.b16 %v460, %v459
    %v535 = vpack.c.b16 %v462, %v461
    %v536 = vpack.c.b16 %v464, %v463
    %v537 = vpack.c.b16 %v466, %v465
    %v538 = vpack.c.b16 %v468, %v467
    %v539 = vpack.c.b16 %v470, %v469
    %v540 = vpack.c.b16 %v472, %v471
    %v541 = vpack.c.b16 %v474, %v473
    %v542 = vpack.c.b16 %v476, %v475
    %v543 = vpack.c.b16 %v478, %v477
    %v544 = vpack.c.b16 %v480, %v479
    %609 = vmatprep.subr.bf16.mxu0 0
    %610 = vmatpush1.bf16.msra.mxu0 %v488
    %611 = vmatprep.subr.bf16.mxu0 0
    %612 = vmatpush1.bf16.msra.mxu0 %v487
    %613 = vmatprep.subr.bf16.mxu0 0
    %614 = vmatpush1.bf16.msra.mxu0 %v486
    %615 = vmatprep.subr.bf16.mxu0 0
    %616 = vmatpush1.bf16.msra.mxu0 %v485
    %617 = vmatprep.subr.bf16.mxu0 0
    %618 = vmatpush1.bf16.msra.mxu0 %v484
    %619 = vmatprep.subr.bf16.mxu0 0
    %620 = vmatpush1.bf16.msra.mxu0 %v483
    %621 = vmatprep.subr.bf16.mxu0 0
    %622 = vmatpush1.bf16.msra.mxu0 %v482
    %623 = vmatprep.subr.bf16.mxu0 0
    %624 = vmatpush1.bf16.msra.mxu0 %v481
    %625 = vmatprep.subr.bf16.mxu0 0
    %626 = vmatpush2.bf16.msra.mxu0 %v496
    %627 = vmatprep.subr.bf16.mxu0 0
    %628 = vmatpush2.bf16.msra.mxu0 %v495
    %629 = vmatprep.subr.bf16.mxu0 0
    %630 = vmatpush2.bf16.msra.mxu0 %v494
    %631 = vmatprep.subr.bf16.mxu0 0
    %632 = vmatpush2.bf16.msra.mxu0 %v493
    %633 = vmatprep.subr.bf16.mxu0 0
    %634 = vmatpush2.bf16.msra.mxu0 %v492
    %635 = vmatprep.subr.bf16.mxu0 0
    %636 = vmatpush2.bf16.msra.mxu0 %v491
    %637 = vmatprep.subr.bf16.mxu0 0
    %638 = vmatpush2.bf16.msra.mxu0 %v490
    %639 = vmatprep.subr.bf16.mxu0 0
    %640 = vmatpush2.bf16.msra.mxu0 %v489
    %641 = vmatprep.mubr.bf16.mxu0 %v210
    %642 = vmatmul.mubr.bf16.gmra.mxu0 %v209
    %v643 = vpop.f32.mrf.mxu0
    %v644 = vadd.f32 %v195, %v643
    %v645 = vpop.f32.mrf.mxu0
    %v646 = vpop.f32.mrf.mxu0
    %v647 = vpop.f32.mrf.mxu0
    %648 = vdwg.mxu0
    %649 = vmatprep.subr.bf16.mxu0 0
    %650 = vmatpush1.bf16.msra.mxu0 %v504
    %651 = vmatprep.subr.bf16.mxu0 0
    %652 = vmatpush1.bf16.msra.mxu0 %v503
    %653 = vmatprep.subr.bf16.mxu0 0
    %654 = vmatpush1.bf16.msra.mxu0 %v502
    %655 = vmatprep.subr.bf16.mxu0 0
    %656 = vmatpush1.bf16.msra.mxu0 %v501
    %657 = vmatprep.subr.bf16.mxu0 0
    %658 = vmatpush1.bf16.msra.mxu0 %v500
    %659 = vmatprep.subr.bf16.mxu0 0
    %660 = vmatpush1.bf16.msra.mxu0 %v499
    %661 = vmatprep.subr.bf16.mxu0 0
    %662 = vmatpush1.bf16.msra.mxu0 %v498
    %663 = vmatprep.subr.bf16.mxu0 0
    %664 = vmatpush1.bf16.msra.mxu0 %v497
    %665 = vmatprep.subr.bf16.mxu0 0
    %666 = vmatpush2.bf16.msra.mxu0 %v512
    %667 = vmatprep.subr.bf16.mxu0 0
    %668 = vmatpush2.bf16.msra.mxu0 %v511
    %669 = vmatprep.subr.bf16.mxu0 0
    %670 = vmatpush2.bf16.msra.mxu0 %v510
    %671 = vmatprep.subr.bf16.mxu0 0
    %672 = vmatpush2.bf16.msra.mxu0 %v509
    %673 = vmatprep.subr.bf16.mxu0 0
    %674 = vmatpush2.bf16.msra.mxu0 %v508
    %675 = vmatprep.subr.bf16.mxu0 0
    %676 = vmatpush2.bf16.msra.mxu0 %v507
    %677 = vmatprep.subr.bf16.mxu0 0
    %678 = vmatpush2.bf16.msra.mxu0 %v506
    %679 = vmatprep.subr.bf16.mxu0 0
    %680 = vmatpush2.bf16.msra.mxu0 %v505
    %681 = vmatprep.mubr.bf16.mxu0 %v212
    %682 = vmatmul.mubr.bf16.gmra.mxu0 %v211
    %v683 = vpop.f32.mrf.mxu0
    %v684 = vadd.f32 %v644, %v683
    %v685 = vpop.f32.mrf.mxu0
    %v686 = vpop.f32.mrf.mxu0
    %v687 = vpop.f32.mrf.mxu0
    %688 = vdwg.mxu0
    %689 = vmatprep.subr.bf16.mxu0 0
    %690 = vmatpush1.bf16.msra.mxu0 %v520
    %691 = vmatprep.subr.bf16.mxu0 0
    %692 = vmatpush1.bf16.msra.mxu0 %v519
    %693 = vmatprep.subr.bf16.mxu0 0
    %694 = vmatpush1.bf16.msra.mxu0 %v518
    %695 = vmatprep.subr.bf16.mxu0 0
    %696 = vmatpush1.bf16.msra.mxu0 %v517
    %697 = vmatprep.subr.bf16.mxu0 0
    %698 = vmatpush1.bf16.msra.mxu0 %v516
    %699 = vmatprep.subr.bf16.mxu0 0
    %700 = vmatpush1.bf16.msra.mxu0 %v515
    %701 = vmatprep.subr.bf16.mxu0 0
    %702 = vmatpush1.bf16.msra.mxu0 %v514
    %703 = vmatprep.subr.bf16.mxu0 0
    %704 = vmatpush1.bf16.msra.mxu0 %v513
    %705 = vmatprep.subr.bf16.mxu0 0
    %706 = vmatpush2.bf16.msra.mxu0 %v528
    %707 = vmatprep.subr.bf16.mxu0 0
    %708 = vmatpush2.bf16.msra.mxu0 %v527
    %709 = vmatprep.subr.bf16.mxu0 0
    %710 = vmatpush2.bf16.msra.mxu0 %v526
    %711 = vmatprep.subr.bf16.mxu0 0
    %712 = vmatpush2.bf16.msra.mxu0 %v525
    %713 = vmatprep.subr.bf16.mxu0 0
    %714 = vmatpush2.bf16.msra.mxu0 %v524
    %715 = vmatprep.subr.bf16.mxu0 0
    %716 = vmatpush2.bf16.msra.mxu0 %v523
    %717 = vmatprep.subr.bf16.mxu0 0
    %718 = vmatpush2.bf16.msra.mxu0 %v522
    %719 = vmatprep.subr.bf16.mxu0 0
    %720 = vmatpush2.bf16.msra.mxu0 %v521
    %721 = vmatprep.mubr.bf16.mxu0 %v214
    %722 = vmatmul.mubr.bf16.gmra.mxu0 %v213
    %v723 = vpop.f32.mrf.mxu0
    %v724 = vadd.f32 %v684, %v723
    %v725 = vpop.f32.mrf.mxu0
    %v726 = vpop.f32.mrf.mxu0
    %v727 = vpop.f32.mrf.mxu0
    %728 = vdwg.mxu0
    %729 = vmatprep.subr.bf16.mxu0 0
    %730 = vmatpush1.bf16.msra.mxu0 %v536
    %731 = vmatprep.subr.bf16.mxu0 0
    %732 = vmatpush1.bf16.msra.mxu0 %v535
    %733 = vmatprep.subr.bf16.mxu0 0
    %734 = vmatpush1.bf16.msra.mxu0 %v534
    %735 = vmatprep.subr.bf16.mxu0 0
    %736 = vmatpush1.bf16.msra.mxu0 %v533
    %737 = vmatprep.subr.bf16.mxu0 0
    %738 = vmatpush1.bf16.msra.mxu0 %v532
    %739 = vmatprep.subr.bf16.mxu0 0
    %740 = vmatpush1.bf16.msra.mxu0 %v531
    %741 = vmatprep.subr.bf16.mxu0 0
    %742 = vmatpush1.bf16.msra.mxu0 %v530
    %743 = vmatprep.subr.bf16.mxu0 0
    %744 = vmatpush1.bf16.msra.mxu0 %v529
    %745 = vmatprep.subr.bf16.mxu0 0
    %746 = vmatpush2.bf16.msra.mxu0 %v544
    %747 = vmatprep.subr.bf16.mxu0 0
    %748 = vmatpush2.bf16.msra.mxu0 %v543
    %749 = vmatprep.subr.bf16.mxu0 0
    %750 = vmatpush2.bf16.msra.mxu0 %v542
    %751 = vmatprep.subr.bf16.mxu0 0
    %752 = vmatpush2.bf16.msra.mxu0 %v541
    %753 = vmatprep.subr.bf16.mxu0 0
    %754 = vmatpush2.bf16.msra.mxu0 %v540
    %755 = vmatprep.subr.bf16.mxu0 0
    %756 = vmatpush2.bf16.msra.mxu0 %v539
    %757 = vmatprep.subr.bf16.mxu0 0
    %758 = vmatpush2.bf16.msra.mxu0 %v538
    %759 = vmatprep.subr.bf16.mxu0 0
    %760 = vmatpush2.bf16.msra.mxu0 %v537
    %761 = vmatprep.mubr.bf16.mxu0 %v216
    %762 = vmatmul.mubr.bf16.gmra.mxu0 %v215
    %v763 = vpop.f32.mrf.mxu0
    %v764 = vadd.f32 %v724, %v763
    %v765 = vpop.f32.mrf.mxu0
    %v766 = vpop.f32.mrf.mxu0
    %v767 = vpop.f32.mrf.mxu0
    %768 = vdwg.mxu0
    %v769 = vmax.f32 %v764, 0.0
    %v770 = vpack.c.bf16 %v769, %v769
    %v771 = vld [vmem:[#allocation7] sm:$0xf]
    %v772 = vld [vmem:[#allocation7 + $0x4] sm:$0xf]
    %v773 = vld [vmem:[#allocation7 + $0x8] sm:$0xf]
    %v774 = vld [vmem:[#allocation7 + $0xc] sm:$0xf]
    %v775 = vld [vmem:[#allocation7 + $0x10] sm:$0xf]
    %v776 = vld [vmem:[#allocation7 + $0x14] sm:$0xf]
    %v777 = vld [vmem:[#allocation7 + $0x18] sm:$0xf]
    %v778 = vld [vmem:[#allocation7 + $0x1c] sm:$0xf]
    %v779 = vld [vmem:[#allocation7 + $0x20] sm:$0xf]
    %v780 = vld [vmem:[#allocation7 + $0x24] sm:$0xf]
    %v781 = vld [vmem:[#allocation7 + $0x28] sm:$0xf]
    %v782 = vld [vmem:[#allocation7 + $0x2c] sm:$0xf]
    %v783 = vld [vmem:[#allocation7 + $0x30] sm:$0xf]
    %v784 = vld [vmem:[#allocation7 + $0x34] sm:$0xf]
    %v785 = vld [vmem:[#allocation7 + $0x38] sm:$0xf]
    %v786 = vld [vmem:[#allocation7 + $0x3c] sm:$0xf]
    %v803 = vunpack.c.l.b16 %v771
    %v804 = vunpack.c.l.b16 %v772
    %v805 = vunpack.c.l.b16 %v773
    %v806 = vunpack.c.l.b16 %v774
    %v807 = vunpack.c.l.b16 %v775
    %v808 = vunpack.c.l.b16 %v776
    %v809 = vunpack.c.l.b16 %v777
    %v810 = vunpack.c.l.b16 %v778
    %v811 = vunpack.c.l.b16 %v779
    %v812 = vunpack.c.l.b16 %v780
    %v813 = vunpack.c.l.b16 %v781
    %v814 = vunpack.c.l.b16 %v782
    %v815 = vunpack.c.l.b16 %v783
    %v816 = vunpack.c.l.b16 %v784
    %v817 = vunpack.c.l.b16 %v785
    %v818 = vunpack.c.l.b16 %v786
    %v819 = vpack.c.b16 %v804, %v803
    %v820 = vpack.c.b16 %v806, %v805
    %v821 = vpack.c.b16 %v808, %v807
    %v822 = vpack.c.b16 %v810, %v809
    %v823 = vpack.c.b16 %v812, %v811
    %v824 = vpack.c.b16 %v814, %v813
    %v825 = vpack.c.b16 %v816, %v815
    %v826 = vpack.c.b16 %v818, %v817
    %835 = vmatprep.subr.bf16.mxu0 0
    %836 = vmatpush1.bf16.msra.mxu0 %v826
    %837 = vmatprep.subr.bf16.mxu0 0
    %838 = vmatpush1.bf16.msra.mxu0 %v825
    %839 = vmatprep.subr.bf16.mxu0 0
    %840 = vmatpush1.bf16.msra.mxu0 %v824
    %841 = vmatprep.subr.bf16.mxu0 0
    %842 = vmatpush1.bf16.msra.mxu0 %v823
    %843 = vmatprep.subr.bf16.mxu0 0
    %844 = vmatpush1.bf16.msra.mxu0 %v822
    %845 = vmatprep.subr.bf16.mxu0 0
    %846 = vmatpush1.bf16.msra.mxu0 %v821
    %847 = vmatprep.subr.bf16.mxu0 0
    %848 = vmatpush1.bf16.msra.mxu0 %v820
    %849 = vmatprep.subr.bf16.mxu0 0
    %850 = vmatpush1.bf16.msra.mxu0 %v819
    %851 = vmatprep.subr.bf16.mxu0 0
    %852 = vmatpush2.bf16.msra.mxu0 0
    %853 = vmatprep.subr.bf16.mxu0 0
    %854 = vmatpush2.bf16.msra.mxu0 0
    %855 = vmatprep.subr.bf16.mxu0 0
    %856 = vmatpush2.bf16.msra.mxu0 0
    %857 = vmatprep.subr.bf16.mxu0 0
    %858 = vmatpush2.bf16.msra.mxu0 0
    %859 = vmatprep.subr.bf16.mxu0 0
    %860 = vmatpush2.bf16.msra.mxu0 0
    %861 = vmatprep.subr.bf16.mxu0 0
    %862 = vmatpush2.bf16.msra.mxu0 0
    %863 = vmatprep.subr.bf16.mxu0 0
    %864 = vmatpush2.bf16.msra.mxu0 0
    %865 = vmatprep.subr.bf16.mxu0 0
    %866 = vmatpush2.bf16.msra.mxu0 0
    %867 = vmatprep.mubr.bf16.mxu0 0
    %868 = vmatmul.mubr.bf16.gmra.mxu0 %v770
    %v869 = vpop.f32.mrf.mxu0
    %v870 = vadd.f32 0.0, %v869
    %v871 = vpop.f32.mrf.mxu0
    %v872 = vpop.f32.mrf.mxu0
    %v873 = vpop.f32.mrf.mxu0
    %874 = vdwg.mxu0
    %875 = vst [vmem:[#allocation8] sm:$0xff] %v870
    // Predicated region
    $region30: #{tpu_custom_call.1} parent=1 // pred_check
      _
    $region31: #{tpu_custom_call.1} parent=1 // pred_check_branch
      %877 = sbr.rel (0) target = $region33
    $region32: #{tpu_custom_call.1} parent=1 // pred_region
      %s879 = ssub.s32 128, 128
      %880 = vsyncadd [#allocation4], %s879
      %s882 = sshll.u32 [#allocation8], 4
      %s883 = int_to_ptr.vmem [resolvable:$true] %s882
      %885 = dma.vmem_to_hbm [thread:$0]  %s883, 128, %s4, [#allocation4]
    $region33: #{tpu_custom_call.1} parent=1 // pred_fallthru
      _
    // Predicated region
    $region34: #{tpu_custom_call.1} parent=1 // pred_check
      _
    $region35: #{tpu_custom_call.1} parent=1 // pred_check_branch
      %887 = sbr.rel (0) target = $region37
    $region36: #{tpu_custom_call.1} parent=1 // pred_region
      %888 = dma.done [#allocation4], 128
    $region37: #{tpu_custom_call.1} parent=1 // pred_fallthru
      _
    %889 = vsyncpa [#allocation3], 1
    %890 = vsyncpa [#allocation6], 1
    %891 = vsyncpa [#allocation4], 1

</llo_original>
